<compile_context>
chip_gen: v7x
topology: tpu7x:2x2x1
jax: 0.10.0
libtpu: 0.0.40
codegen_flags: <defaults>
</compile_context>

<pallas_src>
import functools
import math

import jax
import jax.numpy as jnp
from jax import lax
from jax.experimental import pallas as pl
from jax.experimental.pallas import tpu as pltpu


# Above the 16/32 MiB scoped defaults, below v7x's 64 MiB physical VMEM.
_VMEM_LIMIT_BYTES = 56 * 1024 * 1024


# ---------------------------------------------------------------------------
# helpers
# ---------------------------------------------------------------------------
def _pick_tile(n, cap):
    """Largest tile <= cap that divides n and is a multiple of 8 (or n itself)."""
    if n <= cap:
        return n
    for t in range(cap, 7, -1):
        if n % t == 0 and t % 8 == 0:
            return t
    # TODO(synk): add masked ragged-edge handling instead of full-size fallback.
    return n


def _maybe_cast(x, dtype):
    return x if dtype is None else x.astype(dtype)


# ---------------------------------------------------------------------------
# Fused projection kernel: y = x @ w_cat + b_cat, split into N lane slabs.
# Grid tiles over M only ("parallel"), software pipelined by BlockSpec.
# ---------------------------------------------------------------------------
def _fused_proj_kernel(x_ref, w_ref, b_ref, *out_refs, mxu_dtype=None):
    x = _maybe_cast(x_ref[...], mxu_dtype)
    w = _maybe_cast(w_ref[...], mxu_dtype)
    y = jnp.dot(x, w, preferred_element_type=jnp.float32)
    y = y + b_ref[...].astype(jnp.float32)
    off = 0
    for o_ref in out_refs:
        d = o_ref.shape[-1]
        o_ref[...] = y[:, off:off + d].astype(o_ref.dtype)
        off += d


def fused_projection(x2d, w_cat, b_cat, out_dims, *, tm_cap=256, mxu_dtype=None):
    """x2d @ w_cat + b_cat, outputs split along the last axis per out_dims."""
    M, Din = x2d.shape
    dtot = w_cat.shape[1]
    assert sum(out_dims) == dtot
    tm = _pick_tile(M, tm_cap)
    kernel = functools.partial(_fused_proj_kernel, mxu_dtype=mxu_dtype)
    # TODO(synk): for very large d_model also tile over Dout (and over K with an
    # f32 accumulator scratch) so the fused weight block does not dominate VMEM,
    # and single-buffer the grid-constant weight block (pl.Buffered(1)).
    return pl.pallas_call(
        kernel,
        out_shape=tuple(jax.ShapeDtypeStruct((M, d), x2d.dtype) for d in out_dims),
        grid=(M // tm,),
        in_specs=[
            pl.BlockSpec((tm, Din), lambda i: (i, 0)),
            pl.BlockSpec((Din, dtot), lambda i: (0, 0)),
            pl.BlockSpec((1, dtot), lambda i: (0, 0)),
        ],
        out_specs=tuple(pl.BlockSpec((tm, d), lambda i: (i, 0)) for d in out_dims),
        compiler_params=pltpu.CompilerParams(
            dimension_semantics=("parallel",),
            vmem_limit_bytes=_VMEM_LIMIT_BYTES),
    )(x2d, w_cat, b_cat.reshape(1, dtot))


# ---------------------------------------------------------------------------
# Flash-style attention + fused output projection.
#   grid = (B, Lq_tiles, Sk_tiles); Sk is the "arbitrary" online-softmax axis.
#   Per-head m / l / acc live in VMEM scratch; wo matmul runs ONCE at finalize.
# ---------------------------------------------------------------------------
def _flash_attn_out_kernel(q_ref, k_ref, v_ref, wo_ref, bo_ref, o_ref,
                           m_sc, l_sc, acc_sc, *, n_heads, mxu_dtype=None):
    H = n_heads
    dk = q_ref.shape[-1] // H
    dv = v_ref.shape[-1] // H
    sk = pl.program_id(2)

    @pl.when(sk == 0)
    def _():
        m_sc[...] = jnp.full_like(m_sc, -jnp.inf)
        l_sc[...] = jnp.zeros_like(l_sc)
        acc_sc[...] = jnp.zeros_like(acc_sc)

    cd = mxu_dtype if mxu_dtype is not None else q_ref.dtype
    scale = 1.0 / math.sqrt(dk)
    # Fold 1/sqrt(dk) into q once per tile (scale in f32, then cast for the MXU).
    q = (q_ref[0].astype(jnp.float32) * scale).astype(cd)   # (tq,  H*dk)
    k = k_ref[0].astype(cd)                                  # (tsk, H*dk)
    v = v_ref[0].astype(cd)                                  # (tsk, H*dv)

    # TODO(synk): per-head dk slices are not 128-lane aligned for dk < 128; a
    # head-major (or dk-padded) layout would remove the per-head relayouts.
    for h in range(H):                                       # unrolled; H is small
        q_h = q[:, h * dk:(h + 1) * dk]
        k_h = k[:, h * dk:(h + 1) * dk]
        v_h = v[:, h * dv:(h + 1) * dv]

        # scores = q_h @ k_h^T as a contraction (no explicit transpose)
        s = lax.dot_general(q_h, k_h, (((1,), (1,)), ((), ())),
                            preferred_element_type=jnp.float32)      # (tq, tsk)

        m_prev = m_sc[h]                                             # (tq, 1)
        m_new = jnp.maximum(m_prev, jnp.max(s, axis=-1, keepdims=True))
        alpha = jnp.exp(m_prev - m_new)
        p = jnp.exp(s - m_new)                                       # f32
        l_sc[h] = alpha * l_sc[h] + jnp.sum(p, axis=-1, keepdims=True)
        acc_sc[h] = alpha * acc_sc[h] + lax.dot_general(
            p.astype(cd), v_h, (((1,), (0,)), ((), ())),
            preferred_element_type=jnp.float32)                      # (tq, dv)
        m_sc[h] = m_new

    @pl.when(sk == pl.num_programs(2) - 1)
    def _():
        # Normalize each head once (exact reciprocal), lane-concatenate into a
        # (tq, H*dv) slab, then ONE wide output-projection matmul.
        parts = [acc_sc[h] * pl.reciprocal(l_sc[h]) for h in range(H)]
        o_cat = jnp.concatenate(parts, axis=-1).astype(cd)           # (tq, H*dv)
        wo = _maybe_cast(wo_ref[...], mxu_dtype)
        out = jnp.dot(o_cat, wo, preferred_element_type=jnp.float32)
        o_ref[0] = (out + bo_ref[...].astype(jnp.float32)).astype(o_ref.dtype)


def attention_out_projection(q, k, v, wo, bo, n_heads, *,
                             tq_cap=256, tsk_cap=512, mxu_dtype=None):
    """out[b] = (softmax(q k^T / sqrt(dk)) v) @ wo + bo, heads fused in-kernel."""
    B, Lq, HDk = q.shape
    Sk = k.shape[1]
    HDv = v.shape[-1]
    d_model = wo.shape[-1]
    dv = HDv // n_heads
    tq = _pick_tile(Lq, tq_cap)
    tsk = _pick_tile(Sk, tsk_cap)
    kernel = functools.partial(_flash_attn_out_kernel, n_heads=n_heads,
                               mxu_dtype=mxu_dtype)
    # TODO(synk): single-buffer the grid-constant wo/bo blocks (pl.Buffered(1))
    # once verified on the deployment JAX version.
    return pl.pallas_call(
        kernel,
        out_shape=jax.ShapeDtypeStruct((B, Lq, d_model), q.dtype),
        grid=(B, Lq // tq, Sk // tsk),
        in_specs=[
            pl.BlockSpec((1, tq, HDk), lambda b, i, s: (b, i, 0)),
            pl.BlockSpec((1, tsk, HDk), lambda b, i, s: (b, s, 0)),
            pl.BlockSpec((1, tsk, HDv), lambda b, i, s: (b, s, 0)),
            pl.BlockSpec((HDv, d_model), lambda b, i, s: (0, 0)),
            pl.BlockSpec((1, d_model), lambda b, i, s: (0, 0)),
        ],
        out_specs=pl.BlockSpec((1, tq, d_model), lambda b, i, s: (b, i, 0)),
        scratch_shapes=[
            pltpu.VMEM((n_heads, tq, 1), jnp.float32),   # running max  m
            pltpu.VMEM((n_heads, tq, 1), jnp.float32),   # running sum  l
            pltpu.VMEM((n_heads, tq, dv), jnp.float32),  # running acc  o_h
        ],
        compiler_params=pltpu.CompilerParams(
            dimension_semantics=("parallel", "parallel", "arbitrary"),
            vmem_limit_bytes=_VMEM_LIMIT_BYTES),
    )(q, k, v, wo, bo.reshape(1, d_model))


# ---------------------------------------------------------------------------
# STSAttentionLayer forward
# ---------------------------------------------------------------------------
def sts_attention_layer(params, queries, keys, values, attn_mask=None,
                        adj_mats=None, *, is_self_attention=None, mxu_dtype=None):
    # TODO(synk): attn_mask is not applied (inner attention assumed to be the
    # unmasked FullAttention); adj_mats is unused by the reference forward;
    # dropout is an inference no-op.
    B, L, N1, d_model = queries.shape
    _, S, N2, _ = keys.shape
    H = params["n_heads"]
    Lq, Sk = L * N1, S * N2
    dq = params["wq"].shape[1]
    dk = params["wk"].shape[1]
    dv = params["wv"].shape[1]

    if is_self_attention is None:
        # NOTE: object identity does not survive jit tracing; pass
        # is_self_attention=True explicitly in jitted code.
        is_self_attention = (queries is keys) and (keys is values)

    if is_self_attention:
        # One fused wide-N QKV matmul (pre-concatenated weights from init_params).
        q2d, k2d, v2d = fused_projection(
            queries.reshape(B * Lq, d_model),
            params["wqkv"], params["bqkv"], (dq, dk, dv), mxu_dtype=mxu_dtype)
    else:
        (q2d,) = fused_projection(queries.reshape(B * Lq, d_model),
                                  params["wq"], params["bq"], (dq,),
                                  mxu_dtype=mxu_dtype)
        if keys is values:
            # Fused K+V projection: one activation read, one wide matmul.
            k2d, v2d = fused_projection(keys.reshape(B * Sk, d_model),
                                        params["wkv"], params["bkv"], (dk, dv),
                                        mxu_dtype=mxu_dtype)
        else:
            (k2d,) = fused_projection(keys.reshape(B * Sk, d_model),
                                      params["wk"], params["bk"], (dk,),
                                      mxu_dtype=mxu_dtype)
            (v2d,) = fused_projection(values.reshape(B * Sk, d_model),
                                      params["wv"], params["bv"], (dv,),
                                      mxu_dtype=mxu_dtype)

    # Free (contiguous) reshapes only; no HBM transposes anywhere.
    q = q2d.reshape(B, Lq, dq)
    k = k2d.reshape(B, Sk, dk)
    v = v2d.reshape(B, Sk, dv)

    out = attention_out_projection(q, k, v, params["wo"], params["bo"], H,
                                   mxu_dtype=mxu_dtype)
    return out.reshape(B, L, N1, d_model)


# ---------------------------------------------------------------------------
# Deterministic parameter construction (nn.Linear weights stored as (d_in, d_out))
# ---------------------------------------------------------------------------
def init_params(key, d_model, n_heads):
    d_keys = d_model // n_heads
    d_values = d_model // n_heads
    ks = jax.random.split(key, 8)
    scale = 0.1

    def w(k, din, dout):
        return (scale * jax.random.normal(k, (din, dout))).astype(jnp.float32)

    def b(k, dout):
        return (scale * jax.random.normal(k, (dout,))).astype(jnp.float32)

    p = {
        "n_heads": n_heads,
        "wq": w(ks[0], d_model, d_keys * n_heads), "bq": b(ks[1], d_keys * n_heads),
        "wk": w(ks[2], d_model, d_keys * n_heads), "bk": b(ks[3], d_keys * n_heads),
        "wv": w(ks[4], d_model, d_values * n_heads), "bv": b(ks[5], d_values * n_heads),
        "wo": w(ks[6], d_values * n_heads, d_model), "bo": b(ks[7], d_model),
    }
    # Pre-concatenate fused projection weights ONCE (kept out of the forward path).
    p["wqkv"] = jnp.concatenate([p["wq"], p["wk"], p["wv"]], axis=1)
    p["bqkv"] = jnp.concatenate([p["bq"], p["bk"], p["bv"]])
    p["wkv"] = jnp.concatenate([p["wk"], p["wv"]], axis=1)
    p["bkv"] = jnp.concatenate([p["bk"], p["bv"]])
    return p


# ---------------------------------------------------------------------------
# Pure-JAX reference for validation
# ---------------------------------------------------------------------------
def reference_forward(params, queries, keys, values):
    B, L, N1, d_model = queries.shape
    _, S, N2, _ = keys.shape
    H = params["n_heads"]
    q = queries.reshape(B * L * N1, d_model) @ params["wq"] + params["bq"]
    k = keys.reshape(B * S * N2, d_model) @ params["wk"] + params["bk"]
    v = values.reshape(B * S * N2, d_model) @ params["wv"] + params["bv"]
    dk = params["wq"].shape[1] // H
    dv = params["wv"].shape[1] // H
    q = q.reshape(B, L * N1, H, dk)
    k = k.reshape(B, S * N2, H, dk)
    v = v.reshape(B, S * N2, H, dv)
    s = jnp.einsum("blhe,bshe->bhls", q, k) / jnp.sqrt(jnp.float32(dk))
    p = jax.nn.softmax(s, axis=-1)
    o = jnp.einsum("bhls,bshd->blhd", p, v).reshape(B * L * N1, H * dv)
    out = o @ params["wo"] + params["bo"]
    return out.reshape(B, L, N1, d_model)


if __name__ == "__main__":
    # Small shapes consistent with the module: (B, L, N, d_model)
    B, L, N1, N2, S = 2, 4, 4, 4, 4
    d_model, n_heads = 32, 4

    key = jax.random.PRNGKey(0)
    kx, kq, kk, kv, kp = jax.random.split(key, 5)
    params = init_params(kp, d_model, n_heads)

    # 1) Self-attention (fused QKV projection path, explicit flag).
    x = jax.random.normal(kx, (B, L, N1, d_model), dtype=jnp.float32)
    out_self = sts_attention_layer(params, x, x, x, attn_mask=None, adj_mats=None,
                                   is_self_attention=True)
    out_self = jax.block_until_ready(out_self)
    ref_self = reference_forward(params, x, x, x)
    assert out_self.shape == (B, L, N1, d_model)
    assert jnp.allclose(out_self, ref_self, atol=1e-2, rtol=1e-2), "self-attn mismatch"

    # 2) Cross-attention with distinct K / V sources (separate projection path).
    queries = jax.random.normal(kq, (B, L, N1, d_model), dtype=jnp.float32)
    keys_in = jax.random.normal(kk, (B, S, N2, d_model), dtype=jnp.float32)
    values_in = jax.random.normal(kv, (B, S, N2, d_model), dtype=jnp.float32)
    out_cross = sts_attention_layer(params, queries, keys_in, values_in)
    out_cross = jax.block_until_ready(out_cross)
    ref_cross = reference_forward(params, queries, keys_in, values_in)
    assert out_cross.shape == (B, L, N1, d_model)
    assert jnp.allclose(out_cross, ref_cross, atol=1e-2, rtol=1e-2), "cross-attn mismatch"

    # 3) Cross-attention with shared K/V source (fused KV projection path).
    out_kv = sts_attention_layer(params, queries, keys_in, keys_in)
    out_kv = jax.block_until_ready(out_kv)
    ref_kv = reference_forward(params, queries, keys_in, keys_in)
    assert jnp.allclose(out_kv, ref_kv, atol=1e-2, rtol=1e-2), "fused-KV mismatch"

    # 4) bf16 MXU operands (v6e/v7x fast path); softmax stays f32, looser check.
    out_bf16 = sts_attention_layer(params, x, x, x, is_self_attention=True,
                                   mxu_dtype=jnp.bfloat16)
    out_bf16 = jax.block_until_ready(out_bf16)
    assert out_bf16.shape == (B, L, N1, d_model)
    assert jnp.allclose(out_bf16, ref_self, atol=1e-1, rtol=1e-1), "bf16 mismatch"

    print("KERNEL_OK")
</pallas_src>

<mosaic_0001>
module attributes {stable_mosaic.version = 11 : i64} {
  func.func @_fused_proj_kernel(%arg0: i32, %arg1: memref<32x32xf32, #tpu.memory_space<vmem>>, %arg2: memref<32x96xf32, #tpu.memory_space<vmem>>, %arg3: memref<1x96xf32, #tpu.memory_space<vmem>>, %arg4: memref<32x32xf32, #tpu.memory_space<vmem>>, %arg5: memref<32x32xf32, #tpu.memory_space<vmem>>, %arg6: memref<32x32xf32, #tpu.memory_space<vmem>>) attributes {dimension_semantics = [#tpu.dimension_semantics<parallel>], iteration_bounds = array<i64: 1>, scalar_prefetch = 0 : i64, scratch_operands = 0 : i64, tpu.core_type = #tpu.core_type<tc>, window_params = [{transform_indices = @transform_0, window_bounds = array<i64: 32, 32>}, {pipeline_mode = #tpu.pipeline_mode<synchronous>, transform_indices = @transform_1, window_bounds = array<i64: 32, 96>}, {pipeline_mode = #tpu.pipeline_mode<synchronous>, transform_indices = @transform_2, window_bounds = array<i64: 1, 96>}, {transform_indices = @transform_3, window_bounds = array<i64: 32, 32>}, {transform_indices = @transform_4, window_bounds = array<i64: 32, 32>}, {transform_indices = @transform_5, window_bounds = array<i64: 32, 32>}]} {
    %c0 = arith.constant 0 : index
    %c0_0 = arith.constant 0 : index
    %0 = vector.load %arg1[%c0, %c0_0] : memref<32x32xf32, #tpu.memory_space<vmem>>, vector<32x32xf32>
    %c0_1 = arith.constant 0 : index
    %c0_2 = arith.constant 0 : index
    %1 = vector.load %arg2[%c0_1, %c0_2] : memref<32x96xf32, #tpu.memory_space<vmem>>, vector<32x96xf32>
    %cst = arith.constant dense<0.000000e+00> : vector<32x96xf32>
    %2 = tpu.matmul %0, %1, %cst {dimension_numbers = #tpu.dot_dimension_numbers<[1], [0], [0], [1], [0, 0, 1, 1], [], []>} : vector<32x32xf32>, vector<32x96xf32>, vector<32x96xf32> -> vector<32x96xf32>
    %c0_3 = arith.constant 0 : index
    %c0_4 = arith.constant 0 : index
    %3 = vector.load %arg3[%c0_3, %c0_4] : memref<1x96xf32, #tpu.memory_space<vmem>>, vector<1x96xf32>
    %4 = vector.broadcast %3 : vector<1x96xf32> to vector<32x96xf32>
    %5 = arith.addf %2, %4 : vector<32x96xf32>
    %6 = vector.extract_strided_slice %5 {offsets = [0, 0], sizes = [32, 32], strides = [1, 1]} : vector<32x96xf32> to vector<32x32xf32>
    %c0_5 = arith.constant 0 : index
    %c0_6 = arith.constant 0 : index
    %7 = vector.load %arg4[%c0_5, %c0_6] : memref<32x32xf32, #tpu.memory_space<vmem>>, vector<32x32xf32>
    tpu.vector_store %arg4[%c0_5, %c0_6], %6 {strides = array<i32>} : memref<32x32xf32, #tpu.memory_space<vmem>>, vector<32x32xf32>,
    %8 = vector.extract_strided_slice %5 {offsets = [0, 32], sizes = [32, 32], strides = [1, 1]} : vector<32x96xf32> to vector<32x32xf32>
    %c0_7 = arith.constant 0 : index
    %c0_8 = arith.constant 0 : index
    %9 = vector.load %arg5[%c0_7, %c0_8] : memref<32x32xf32, #tpu.memory_space<vmem>>, vector<32x32xf32>
    tpu.vector_store %arg5[%c0_7, %c0_8], %8 {strides = array<i32>} : memref<32x32xf32, #tpu.memory_space<vmem>>, vector<32x32xf32>,
    %10 = vector.extract_strided_slice %5 {offsets = [0, 64], sizes = [32, 32], strides = [1, 1]} : vector<32x96xf32> to vector<32x32xf32>
    %c0_9 = arith.constant 0 : index
    %c0_10 = arith.constant 0 : index
    %11 = vector.load %arg6[%c0_9, %c0_10] : memref<32x32xf32, #tpu.memory_space<vmem>>, vector<32x32xf32>
    tpu.vector_store %arg6[%c0_9, %c0_10], %10 {strides = array<i32>} : memref<32x32xf32, #tpu.memory_space<vmem>>, vector<32x32xf32>,
    return
  }
  func.func @transform_0(%arg0: i32) -> (i32, i32) {
    %c0_i32 = arith.constant 0 : i32
    %c0_i32_0 = arith.constant 0 : i32
    return %arg0, %c0_i32 : i32, i32
  }
  func.func @transform_1(%arg0: i32) -> (i32, i32) {
    %c0_i32 = arith.constant 0 : i32
    %c0_i32_0 = arith.constant 0 : i32
    %c0_i32_1 = arith.constant 0 : i32
    return %c0_i32, %c0_i32_0 : i32, i32
  }
  func.func @transform_2(%arg0: i32) -> (i32, i32) {
    %c0_i32 = arith.constant 0 : i32
    %c0_i32_0 = arith.constant 0 : i32
    %c0_i32_1 = arith.constant 0 : i32
    return %c0_i32, %c0_i32_0 : i32, i32
  }
  func.func @transform_3(%arg0: i32) -> (i32, i32) {
    %c0_i32 = arith.constant 0 : i32
    %c0_i32_0 = arith.constant 0 : i32
    return %arg0, %c0_i32 : i32, i32
  }
  func.func @transform_4(%arg0: i32) -> (i32, i32) {
    %c0_i32 = arith.constant 0 : i32
    %c0_i32_0 = arith.constant 0 : i32
    return %arg0, %c0_i32 : i32, i32
  }
  func.func @transform_5(%arg0: i32) -> (i32, i32) {
    %c0_i32 = arith.constant 0 : i32
    %c0_i32_0 = arith.constant 0 : i32
    return %arg0, %c0_i32 : i32, i32
  }
}

</mosaic_0001>

<llo_original>
// kernel: tpu_custom_call.1
$region0: #{tpu_custom_call.1}
  #allocation0 [shape = 'u32[]', space=smem, size = 0x4, offset = 0x4, fixed_abs, tag = 'smem constant byte address 0x4 - core index']
  #allocation1 [shape = 'u32[144,128]{1,0:T(1,128)}', space=vmem, size = 0x12000, scoped, tag = 'internal scratch']
  %s0 = inlined_call_operand.hbm [shape: f32[32,32], index: 0, kind: input, shape index: {}]
  %s1 = inlined_call_operand.hbm [shape: f32[32,96], index: 1, kind: input, shape index: {}]
  %s2 = inlined_call_operand.vmem [shape: f32[1,96], index: 2, kind: input, shape index: {}]
  %s3 = inlined_call_operand.hbm [shape: f32[32,32], index: 3, kind: output, shape index: {0}]
  %s4 = inlined_call_operand.hbm [shape: f32[32,32], index: 4, kind: output, shape index: {1}]
  %s5 = inlined_call_operand.hbm [shape: f32[32,32], index: 5, kind: output, shape index: {2}]
  %6 = xla_tuple %s3, %s4, %s5
  %s7 = sld [smem:[#allocation0]]
  $region46: #{tpu_custom_call.1} parent=0
    _
  %s9 = ssub.s32 1, %s7
  %s10 = scalar_select 0, %s9, %s7
  $region1: #{tpu_custom_call.1} parent=0
    #allocation2 [shape = 'u8[16384]{0}', space=vmem, size = 0x4000, scoped, tag = 'input window, operand 0, single buffered']
    #allocation3 [shape = 's32[1]{0}', space=sflag, size = 0x4, scoped, tag = 'scoped memory for tpu_custom_call.1']
    #allocation4 [shape = 's32[1]{0}', space=sflag, size = 0x4, scoped, tag = 'scoped memory for tpu_custom_call.1']
    #allocation5 [shape = 'u8[16384]{0}', space=vmem, size = 0x4000, scoped, tag = 'input window, operand 1, single buffered']
    #allocation6 [shape = 's32[1]{0}', space=sflag, size = 0x4, scoped, tag = 'scoped memory for tpu_custom_call.1']
    #allocation7 [shape = 'u8[16384]{0}', space=vmem, size = 0x4000, scoped, tag = 'output window, operand 0, single buffered']
    #allocation8 [shape = 'u8[16384]{0}', space=vmem, size = 0x4000, scoped, tag = 'output window, operand 1, single buffered']
    #allocation9 [shape = 's32[1]{0}', space=sflag, size = 0x4, scoped, tag = 'scoped memory for tpu_custom_call.1']
    #allocation10 [shape = 'u8[16384]{0}', space=vmem, size = 0x4000, scoped, tag = 'output window, operand 2, single buffered']
    %11 = vsyncpa [#allocation3], 0
    %12 = vsyncpa [#allocation6], 0
    %13 = vsyncpa [#allocation4], 0
    %14 = vsyncpa [#allocation9], 0
    // Predicated region
    $region2: #{tpu_custom_call.1} parent=1 // pred_check
      _
    $region3: #{tpu_custom_call.1} parent=1 // pred_check_branch
      %16 = sbr.rel (0) target = $region5
    $region4: #{tpu_custom_call.1} parent=1 // pred_region
      %s18 = ssub.s32 512, 512
      %19 = vsyncadd [#allocation3], %s18
      %s20 = sshll.u32 [#allocation2], 4
      %s21 = int_to_ptr.vmem [resolvable:$true] %s20
      %26 = dma.hbm_to_vmem [thread:$0]  %s0, 512, %s21, [#allocation3], 128, 128, 8
    $region5: #{tpu_custom_call.1} parent=1 // pred_fallthru
      _
    // Predicated region
    $region6: #{tpu_custom_call.1} parent=1 // pred_check
      _
    $region7: #{tpu_custom_call.1} parent=1 // pred_check_branch
      %28 = sbr.rel (0) target = $region9
    $region8: #{tpu_custom_call.1} parent=1 // pred_region
      %s30 = ssub.s32 512, 512
      %31 = vsyncadd [#allocation6], %s30
      %s32 = sshll.u32 [#allocation5], 4
      %s33 = int_to_ptr.vmem [resolvable:$true] %s32
      %38 = dma.hbm_to_vmem [thread:$0]  %s1, 512, %s33, [#allocation6], 128, 128, 8
    $region9: #{tpu_custom_call.1} parent=1 // pred_fallthru
      _
    // Predicated region
    $region10: #{tpu_custom_call.1} parent=1 // pred_check
      _
    $region11: #{tpu_custom_call.1} parent=1 // pred_check_branch
      %40 = sbr.rel (0) target = $region13
    $region12: #{tpu_custom_call.1} parent=1 // pred_region
      _
    $region13: #{tpu_custom_call.1} parent=1 // pred_fallthru
      _
    // Predicated region
    $region14: #{tpu_custom_call.1} parent=1 // pred_check
      _
    $region15: #{tpu_custom_call.1} parent=1 // pred_check_branch
      %42 = sbr.rel (0) target = $region17
    $region16: #{tpu_custom_call.1} parent=1 // pred_region
      %43 = dma.done [#allocation3], 512
    $region17: #{tpu_custom_call.1} parent=1 // pred_fallthru
      _
    // Predicated region
    $region18: #{tpu_custom_call.1} parent=1 // pred_check
      _
    $region19: #{tpu_custom_call.1} parent=1 // pred_check_branch
      %45 = sbr.rel (0) target = $region21
    $region20: #{tpu_custom_call.1} parent=1 // pred_region
      %46 = dma.done [#allocation6], 512
    $region21: #{tpu_custom_call.1} parent=1 // pred_fallthru
      _
    %v47 = vld [vmem:[#allocation2] sm:$0xff]
    %v48 = vld [vmem:[#allocation2 + $0x8] sm:$0xff]
    %v49 = vld [vmem:[#allocation2 + $0x10] sm:$0xff]
    %v50 = vld [vmem:[#allocation2 + $0x18] sm:$0xff]
    %v51 = vld [vmem:[#allocation5] sm:$0xff]
    %v52 = vld [vmem:[#allocation5 + $0x8] sm:$0xff]
    %v53 = vld [vmem:[#allocation5 + $0x10] sm:$0xff]
    %v54 = vld [vmem:[#allocation5 + $0x18] sm:$0xff]
    %v55 = vld [vmem:[%s2] sm:$0x1]
    %v57 = vlaneseq
    %v58 = vshrl.u32 %v57, 7
    %v59 = vsub.s32 0, %v58
    %v60 = vrot.slane %v55, %v59
    %vm62 = vcmask 261120
    %v64 = vsel %vm62, %v47, 0
    %v67 = vsel %vm62, %v48, 0
    %v70 = vsel %vm62, %v49, 0
    %v73 = vsel %vm62, %v50, 0
    %75 = vmatprep.subr.mxu0 0.0
    %76 = vmatpush1.msra.mxu0 %v51
    %77 = vmatprep.subr.mxu0 0.0
    %78 = vmatpush1.msra.mxu0 %v52
    %79 = vmatprep.subr.mxu0 0.0
    %80 = vmatpush1.msra.mxu0 %v53
    %81 = vmatprep.subr.mxu0 0.0
    %82 = vmatpush1.msra.mxu0 %v54
    %83 = vmatprep.subr.mxu0 0.0
    %84 = vmatpush1.msra.mxu0 0.0
    %85 = vmatprep.subr.mxu0 0.0
    %86 = vmatpush1.msra.mxu0 0.0
    %87 = vmatprep.subr.mxu0 0.0
    %88 = vmatpush1.msra.mxu0 0.0
    %89 = vmatprep.subr.mxu0 0.0
    %90 = vmatpush1.msra.mxu0 0.0
    %91 = vmatprep.subr.mxu0 0.0
    %92 = vmatpush1.msra.mxu0 0.0
    %93 = vmatprep.subr.mxu0 0.0
    %94 = vmatpush1.msra.mxu0 0.0
    %95 = vmatprep.subr.mxu0 0.0
    %96 = vmatpush1.msra.mxu0 0.0
    %97 = vmatprep.subr.mxu0 0.0
    %98 = vmatpush1.msra.mxu0 0.0
    %99 = vmatprep.subr.mxu0 0.0
    %100 = vmatpush1.msra.mxu0 0.0
    %101 = vmatprep.subr.mxu0 0.0
    %102 = vmatpush1.msra.mxu0 0.0
    %103 = vmatprep.subr.mxu0 0.0
    %104 = vmatpush1.msra.mxu0 0.0
    %105 = vmatprep.subr.mxu0 0.0
    %106 = vmatpush1.msra.mxu0 0.0
    %107 = vmatprep.subr.mxu0 0.0
    %108 = vmatpush1.msra.mxu0 0.0
    %109 = vmatprep.subr.mxu0 0.0
    %110 = vmatpush1.msra.mxu0 0.0
    %111 = vmatprep.subr.mxu0 0.0
    %112 = vmatpush1.msra.mxu0 0.0
    %113 = vmatprep.subr.mxu0 0.0
    %114 = vmatpush1.msra.mxu0 0.0
    %115 = vmatprep.subr.mxu0 0.0
    %116 = vmatpush1.msra.mxu0 0.0
    %117 = vmatprep.subr.mxu0 0.0
    %118 = vmatpush1.msra.mxu0 0.0
    %119 = vmatprep.subr.mxu0 0.0
    %120 = vmatpush1.msra.mxu0 0.0
    %121 = vmatprep.subr.mxu0 0.0
    %122 = vmatpush1.msra.mxu0 0.0
    %123 = vmatprep.subr.mxu0 0.0
    %124 = vmatpush1.msra.mxu0 0.0
    %125 = vmatprep.subr.mxu0 0.0
    %126 = vmatpush1.msra.mxu0 0.0
    %127 = vmatprep.subr.mxu0 0.0
    %128 = vmatpush1.msra.mxu0 0.0
    %129 = vmatprep.subr.mxu0 0.0
    %130 = vmatpush1.msra.mxu0 0.0
    %131 = vmatprep.subr.mxu0 0.0
    %132 = vmatpush1.msra.mxu0 0.0
    %133 = vmatprep.subr.mxu0 0.0
    %134 = vmatpush1.msra.mxu0 0.0
    %135 = vmatprep.subr.mxu0 0.0
    %136 = vmatpush1.msra.mxu0 0.0
    %137 = vmatprep.subr.mxu0 0.0
    %138 = vmatpush1.msra.mxu0 0.0
    %139 = vmatprep.mubr.f32.mxu0 0.0
    %140 = vmatmul.mubr.f32.gmra.mrb[0].mxu0 %v64
    %v141 = vpop.f32.mrb[0].mxu0
    %v142 = vadd.f32 %v60, %v141
    %v143 = vpop.f32.mrb[0].mxu0
    %144 = vmatprep.mubr.f32.mxu0 0.0
    %145 = vmatmul.mubr.f32.gmra.mrb[0].mxu0 %v67
    %v146 = vpop.f32.mrb[0].mxu0
    %v147 = vadd.f32 %v60, %v146
    %v148 = vpop.f32.mrb[0].mxu0
    %149 = vmatprep.mubr.f32.mxu0 0.0
    %150 = vmatmul.mubr.f32.gmra.mrb[0].mxu0 %v70
    %v151 = vpop.f32.mrb[0].mxu0
    %v152 = vadd.f32 %v60, %v151
    %v153 = vpop.f32.mrb[0].mxu0
    %154 = vmatprep.mubr.f32.mxu0 0.0
    %155 = vmatmul.mubr.f32.gmra.mrb[0].mxu0 %v73
    %v156 = vpop.f32.mrb[0].mxu0
    %v157 = vadd.f32 %v60, %v156
    %v158 = vpop.f32.mrb[0].mxu0
    %159 = vdwg.mxu0
    %160 = vst.msk [vmem:[#allocation7] sm:$0xff] %vm62, %v142
    %161 = vst.msk [vmem:[#allocation7 + $0x8] sm:$0xff] %vm62, %v147
    %162 = vst.msk [vmem:[#allocation7 + $0x10] sm:$0xff] %vm62, %v152
    %163 = vst.msk [vmem:[#allocation7 + $0x18] sm:$0xff] %vm62, %v157
    %168 = vrot.lane.b32.xlu0 %v142, 96
    %v169 = vpop.permute.xlu0 %168
    %170 = vrot.lane.b32.xlu0 %v147, 96
    %v171 = vpop.permute.xlu0 %170
    %172 = vrot.lane.b32.xlu0 %v152, 96
    %v173 = vpop.permute.xlu0 %172
    %174 = vrot.lane.b32.xlu0 %v157, 96
    %v175 = vpop.permute.xlu0 %174
    %180 = vst.msk [vmem:[#allocation8] sm:$0xff] %vm62, %v169
    %181 = vst.msk [vmem:[#allocation8 + $0x8] sm:$0xff] %vm62, %v171
    %182 = vst.msk [vmem:[#allocation8 + $0x10] sm:$0xff] %vm62, %v173
    %183 = vst.msk [vmem:[#allocation8 + $0x18] sm:$0xff] %vm62, %v175
    %184 = vrot.lane.b32.xlu0 %v142, 64
    %v185 = vpop.permute.xlu0 %184
    %186 = vrot.lane.b32.xlu0 %v147, 64
    %v187 = vpop.permute.xlu0 %186
    %188 = vrot.lane.b32.xlu0 %v152, 64
    %v189 = vpop.permute.xlu0 %188
    %190 = vrot.lane.b32.xlu0 %v157, 64
    %v191 = vpop.permute.xlu0 %190
    %196 = vst.msk [vmem:[#allocation10] sm:$0xff] %vm62, %v185
    %197 = vst.msk [vmem:[#allocation10 + $0x8] sm:$0xff] %vm62, %v187
    %198 = vst.msk [vmem:[#allocation10 + $0x10] sm:$0xff] %vm62, %v189
    %199 = vst.msk [vmem:[#allocation10 + $0x18] sm:$0xff] %vm62, %v191
    // Predicated region
    $region22: #{tpu_custom_call.1} parent=1 // pred_check
      _
    $region23: #{tpu_custom_call.1} parent=1 // pred_check_branch
      %201 = sbr.rel (0) target = $region25
    $region24: #{tpu_custom_call.1} parent=1 // pred_region
      %s203 = ssub.s32 512, 512
      %204 = vsyncadd [#allocation4], %s203
      %s205 = sshll.u32 [#allocation7], 4
      %s206 = int_to_ptr.vmem [resolvable:$true] %s205
      %211 = dma.vmem_to_hbm [thread:$0]  %s206, 512, %s3, [#allocation4], 128, 128, 8
    $region25: #{tpu_custom_call.1} parent=1 // pred_fallthru
      _
    // Predicated region
    $region26: #{tpu_custom_call.1} parent=1 // pred_check
      _
    $region27: #{tpu_custom_call.1} parent=1 // pred_check_branch
      %213 = sbr.rel (0) target = $region29
    $region28: #{tpu_custom_call.1} parent=1 // pred_region
      %s215 = ssub.s32 512, 512
      %216 = vsyncadd [#allocation9], %s215
      %s217 = sshll.u32 [#allocation8], 4
      %s218 = int_to_ptr.vmem [resolvable:$true] %s217
      %223 = dma.vmem_to_hbm [thread:$0]  %s218, 512, %s4, [#allocation9], 128, 128, 8
    $region29: #{tpu_custom_call.1} parent=1 // pred_fallthru
      _
    // Predicated region
    $region30: #{tpu_custom_call.1} parent=1 // pred_check
      _
    $region31: #{tpu_custom_call.1} parent=1 // pred_check_branch
      %225 = sbr.rel (0) target = $region33
    $region32: #{tpu_custom_call.1} parent=1 // pred_region
      %s227 = ssub.s32 512, 512
      %228 = vsyncadd [#allocation9], %s227
      %s229 = sshll.u32 [#allocation10], 4
      %s230 = int_to_ptr.vmem [resolvable:$true] %s229
      %235 = dma.vmem_to_hbm [thread:$0]  %s230, 512, %s5, [#allocation9], 128, 128, 8
    $region33: #{tpu_custom_call.1} parent=1 // pred_fallthru
      _
    // Predicated region
    $region34: #{tpu_custom_call.1} parent=1 // pred_check
      _
    $region35: #{tpu_custom_call.1} parent=1 // pred_check_branch
      %237 = sbr.rel (0) target = $region37
    $region36: #{tpu_custom_call.1} parent=1 // pred_region
      %238 = dma.done [#allocation4], 512
    $region37: #{tpu_custom_call.1} parent=1 // pred_fallthru
      _
    // Predicated region
    $region38: #{tpu_custom_call.1} parent=1 // pred_check
      _
    $region39: #{tpu_custom_call.1} parent=1 // pred_check_branch
      %240 = sbr.rel (0) target = $region41
    $region40: #{tpu_custom_call.1} parent=1 // pred_region
      %241 = dma.done [#allocation9], 512
    $region41: #{tpu_custom_call.1} parent=1 // pred_fallthru
      _
    // Predicated region
    $region42: #{tpu_custom_call.1} parent=1 // pred_check
      _
    $region43: #{tpu_custom_call.1} parent=1 // pred_check_branch
      %243 = sbr.rel (0) target = $region45
    $region44: #{tpu_custom_call.1} parent=1 // pred_region
      %244 = dma.done [#allocation9], 512
    $region45: #{tpu_custom_call.1} parent=1 // pred_fallthru
      _
    %245 = vsyncpa [#allocation3], 1
    %246 = vsyncpa [#allocation6], 1
    %247 = vsyncpa [#allocation4], 1
    %248 = vsyncpa [#allocation9], 1

</llo_original>
